<compile_context>
chip_gen: v5e
topology: v5e:2x2
jax: 0.10.0
libtpu: 0.0.40
codegen_flags: <defaults>
</compile_context>

<pallas_src>
import jax
import jax.numpy as jnp
from jax.experimental import pallas as pl
from jax.experimental.pallas import tpu as pltpu

_MAX_BLOCK_N = 4096  # rows per grid step; x block = 4096*32*2B = 256 KiB (bf16), tiny vs VMEM


def _round_up(x, m):
    return ((x + m - 1) // m) * m


def _mlp_kernel(x_ref, w1_ref, b1_ref, w2_ref, b2_ref, w3_ref, b3_ref,
                out_ref, feat_ref):
    # fc1 (bf16 inputs, f32 accumulate) + bias + ReLU   (dropout = identity in eval mode)
    h1 = jnp.dot(x_ref[...], w1_ref[...],
                 preferred_element_type=jnp.float32) + b1_ref[...]      # (BN, 32) f32
    h1 = jnp.maximum(h1, 0.0)

    # fc2 -> feat (f32)
    feat = jnp.dot(h1, w2_ref[...],
                   preferred_element_type=jnp.float32) + b2_ref[...]    # (BN, 16)
    feat_ref[...] = feat

    # (dropout = identity) fc3 as a VPU reduction (16 -> 1), then sigmoid (EUP), all f32
    logit = jnp.sum(feat * w3_ref[...], axis=-1, keepdims=True) + b3_ref[...]  # (BN, 1)
    out_ref[...] = jax.nn.sigmoid(logit)


def network_forward(x, params):
    """x: (N, input_dim) float32. params: dict of weights/biases (see init_params)."""
    n, d = x.shape
    w1, b1 = params["w1"], params["b1"]        # (D,32), (1,32)
    w2, b2 = params["w2"], params["b2"]        # (32,16), (1,16)
    w3_row, b3 = params["w3_row"], params["b3"]  # (1,16), (1,1)

    # Row tile: as big as allowed (memory-bound kernel), rounded to sublane multiple of 8.
    block_n = min(_MAX_BLOCK_N, _round_up(n, 8))
    n_pad = _round_up(n, block_n)
    if n_pad != n:
        x = jnp.pad(x, ((0, n_pad - n), (0, 0)))
    grid = (n_pad // block_n,)

    # bf16 streaming of the dominant HBM traffic (x) and its matching weight.
    x_bf16 = x.astype(jnp.bfloat16)
    w1_bf16 = w1.astype(jnp.bfloat16)

    flops = 2 * n_pad * (d * 32 + 32 * 16 + 16)
    bytes_accessed = (n_pad * d * 2                 # x (bf16)
                      + n_pad * (16 + 1) * 4        # feat + sigmoid out (f32)
                      + d * 32 * 2                  # w1 (bf16)
                      + (32 * 16 + 32 + 16 + 16 + 1) * 4)  # w2/biases/w3 (f32)

    out, feat = pl.pallas_call(
        _mlp_kernel,
        out_shape=(
            jax.ShapeDtypeStruct((n_pad, 1), jnp.float32),    # sigmoid output
            jax.ShapeDtypeStruct((n_pad, 16), jnp.float32),   # feat
        ),
        grid=grid,
        in_specs=[
            pl.BlockSpec((block_n, d), lambda i: (i, 0)),     # x: tiled over batch
            pl.BlockSpec((d, 32), lambda i: (0, 0)),          # w1: resident
            pl.BlockSpec((1, 32), lambda i: (0, 0)),          # b1
            pl.BlockSpec((32, 16), lambda i: (0, 0)),         # w2
            pl.BlockSpec((1, 16), lambda i: (0, 0)),          # b2
            pl.BlockSpec((1, 16), lambda i: (0, 0)),          # w3 row
            pl.BlockSpec((1, 1), lambda i: (0, 0)),           # b3
        ],
        out_specs=(
            pl.BlockSpec((block_n, 1), lambda i: (i, 0)),
            pl.BlockSpec((block_n, 16), lambda i: (i, 0)),
        ),
        compiler_params=pltpu.CompilerParams(
            dimension_semantics=("parallel",)),
        cost_estimate=pl.CostEstimate(
            flops=flops, transcendentals=n_pad, bytes_accessed=bytes_accessed),
    )(x_bf16, w1_bf16, b1, w2, b2, w3_row, b3)

    if n_pad != n:
        out = out[:n]
        feat = feat[:n]
    return [out, feat]


def init_params(input_dim, key):
    """Deterministic parameter init matching nn.Linear layers of the module."""
    ks = jax.random.split(key, 6)

    def linear(kw, kb, fan_in, fan_out):
        bound = 1.0 / jnp.sqrt(fan_in)
        # Stored as (in, out) == transposed PyTorch weight (out, in).
        w = jax.random.uniform(kw, (fan_in, fan_out), jnp.float32, -bound, bound)
        b = jax.random.uniform(kb, (1, fan_out), jnp.float32, -bound, bound)
        return w, b

    w1, b1 = linear(ks[0], ks[1], input_dim, 32)
    w2, b2 = linear(ks[2], ks[3], 32, 16)
    w3, b3 = linear(ks[4], ks[5], 16, 1)
    # fc3 weight kept as a (1, 16) row for the in-kernel VPU reduction.
    return {"w1": w1, "b1": b1, "w2": w2, "b2": b2,
            "w3_row": w3.T, "b3": b3}


if __name__ == "__main__":
    key = jax.random.PRNGKey(0)
    k_x, k_p = jax.random.split(key)

    input_dim = 32
    batch = 8
    x = jax.random.normal(k_x, (batch, input_dim), dtype=jnp.float32)
    params = init_params(input_dim, k_p)

    out, feat = network_forward(x, params)
    jax.block_until_ready(out)
    jax.block_until_ready(feat)

    # Sanity check against pure-JAX f32 reference (inference semantics).
    # x/w1 streamed in bf16 inside the kernel -> expect ~1e-2 relative error.
    h1 = jnp.maximum(x @ params["w1"] + params["b1"], 0.0)
    feat_ref = h1 @ params["w2"] + params["b2"]
    out_ref = jax.nn.sigmoid(
        jnp.sum(feat_ref * params["w3_row"], axis=-1, keepdims=True) + params["b3"])
    assert out.shape == (batch, 1) and feat.shape == (batch, 16)
    assert jnp.allclose(feat, feat_ref, atol=3e-2), "feat mismatch"
    assert jnp.allclose(out, out_ref, atol=3e-2), "sigmoid output mismatch"

    print("KERNEL_OK")
</pallas_src>

<mosaic_0001>
module attributes {stable_mosaic.version = 11 : i64} {
  func.func @_mlp_kernel(%arg0: i32, %arg1: memref<8x32xbf16, #tpu.memory_space<vmem>>, %arg2: memref<32x32xbf16, #tpu.memory_space<vmem>>, %arg3: memref<1x32xf32, #tpu.memory_space<vmem>>, %arg4: memref<32x16xf32, #tpu.memory_space<vmem>>, %arg5: memref<1x16xf32, #tpu.memory_space<vmem>>, %arg6: memref<1x16xf32, #tpu.memory_space<vmem>>, %arg7: memref<1x1xf32, #tpu.memory_space<vmem>>, %arg8: memref<8x1xf32, #tpu.memory_space<vmem>>, %arg9: memref<8x16xf32, #tpu.memory_space<vmem>>) attributes {dimension_semantics = [#tpu.dimension_semantics<parallel>], iteration_bounds = array<i64: 1>, scalar_prefetch = 0 : i64, scratch_operands = 0 : i64, tpu.core_type = #tpu.core_type<tc>, window_params = [{transform_indices = @transform_0, window_bounds = array<i64: 8, 32>}, {pipeline_mode = #tpu.pipeline_mode<synchronous>, transform_indices = @transform_1, window_bounds = array<i64: 32, 32>}, {pipeline_mode = #tpu.pipeline_mode<synchronous>, transform_indices = @transform_2, window_bounds = array<i64: 1, 32>}, {pipeline_mode = #tpu.pipeline_mode<synchronous>, transform_indices = @transform_3, window_bounds = array<i64: 32, 16>}, {pipeline_mode = #tpu.pipeline_mode<synchronous>, transform_indices = @transform_4, window_bounds = array<i64: 1, 16>}, {pipeline_mode = #tpu.pipeline_mode<synchronous>, transform_indices = @transform_5, window_bounds = array<i64: 1, 16>}, {pipeline_mode = #tpu.pipeline_mode<synchronous>, transform_indices = @transform_6, window_bounds = array<i64: 1, 1>}, {transform_indices = @transform_7, window_bounds = array<i64: 8, 1>}, {transform_indices = @transform_8, window_bounds = array<i64: 8, 16>}]} {
    %c0 = arith.constant 0 : index
    %c0_0 = arith.constant 0 : index
    %0 = vector.load %arg1[%c0, %c0_0] : memref<8x32xbf16, #tpu.memory_space<vmem>>, vector<8x32xbf16>
    %c0_1 = arith.constant 0 : index
    %c0_2 = arith.constant 0 : index
    %1 = vector.load %arg2[%c0_1, %c0_2] : memref<32x32xbf16, #tpu.memory_space<vmem>>, vector<32x32xbf16>
    %cst = arith.constant dense<0.000000e+00> : vector<8x32xf32>
    %2 = tpu.matmul %0, %1, %cst {dimension_numbers = #tpu.dot_dimension_numbers<[1], [0], [0], [1], [0, 0, 1, 1], [], []>} : vector<8x32xbf16>, vector<32x32xbf16>, vector<8x32xf32> -> vector<8x32xf32>
    %c0_3 = arith.constant 0 : index
    %c0_4 = arith.constant 0 : index
    %3 = vector.load %arg3[%c0_3, %c0_4] : memref<1x32xf32, #tpu.memory_space<vmem>>, vector<1x32xf32>
    %4 = vector.broadcast %3 : vector<1x32xf32> to vector<8x32xf32>
    %5 = arith.addf %2, %4 : vector<8x32xf32>
    %cst_5 = arith.constant 0.000000e+00 : f32
    %6 = vector.broadcast %cst_5 : f32 to vector<8x32xf32>
    %7 = arith.maximumf %5, %6 : vector<8x32xf32>
    %c0_6 = arith.constant 0 : index
    %c0_7 = arith.constant 0 : index
    %8 = vector.load %arg4[%c0_6, %c0_7] : memref<32x16xf32, #tpu.memory_space<vmem>>, vector<32x16xf32>
    %cst_8 = arith.constant dense<0.000000e+00> : vector<8x16xf32>
    %9 = tpu.matmul %7, %8, %cst_8 {dimension_numbers = #tpu.dot_dimension_numbers<[1], [0], [0], [1], [0, 0, 1, 1], [], []>} : vector<8x32xf32>, vector<32x16xf32>, vector<8x16xf32> -> vector<8x16xf32>
    %c0_9 = arith.constant 0 : index
    %c0_10 = arith.constant 0 : index
    %10 = vector.load %arg5[%c0_9, %c0_10] : memref<1x16xf32, #tpu.memory_space<vmem>>, vector<1x16xf32>
    %11 = vector.broadcast %10 : vector<1x16xf32> to vector<8x16xf32>
    %12 = arith.addf %9, %11 : vector<8x16xf32>
    %c0_11 = arith.constant 0 : index
    %c0_12 = arith.constant 0 : index
    %13 = vector.load %arg9[%c0_11, %c0_12] : memref<8x16xf32, #tpu.memory_space<vmem>>, vector<8x16xf32>
    tpu.vector_store %arg9[%c0_11, %c0_12], %12 {strides = array<i32>} : memref<8x16xf32, #tpu.memory_space<vmem>>, vector<8x16xf32>,
    %c0_13 = arith.constant 0 : index
    %c0_14 = arith.constant 0 : index
    %14 = vector.load %arg6[%c0_13, %c0_14] : memref<1x16xf32, #tpu.memory_space<vmem>>, vector<1x16xf32>
    %15 = vector.broadcast %14 : vector<1x16xf32> to vector<8x16xf32>
    %16 = arith.mulf %12, %15 : vector<8x16xf32>
    %cst_15 = arith.constant dense<0.000000e+00> : vector<8xf32>
    %17 = vector.multi_reduction <add>, %16, %cst_15 [1] : vector<8x16xf32> to vector<8xf32>
    %18 = vector.shape_cast %17 : vector<8xf32> to vector<8x1xf32>
    %c0_16 = arith.constant 0 : index
    %c0_17 = arith.constant 0 : index
    %19 = vector.load %arg7[%c0_16, %c0_17] : memref<1x1xf32, #tpu.memory_space<vmem>>, vector<1x1xf32>
    %20 = vector.broadcast %19 : vector<1x1xf32> to vector<8x1xf32>
    %21 = arith.addf %18, %20 : vector<8x1xf32>
    %22 = arith.negf %21 : vector<8x1xf32>
    %23 = math.exp %22 : vector<8x1xf32>
    %cst_18 = arith.constant 1.000000e+00 : f32
    %24 = vector.broadcast %cst_18 : f32 to vector<8x1xf32>
    %25 = arith.addf %24, %23 : vector<8x1xf32>
    %26 = arith.divf %24, %25 : vector<8x1xf32>
    %c0_19 = arith.constant 0 : index
    %c0_20 = arith.constant 0 : index
    %27 = vector.load %arg8[%c0_19, %c0_20] : memref<8x1xf32, #tpu.memory_space<vmem>>, vector<8x1xf32>
    tpu.vector_store %arg8[%c0_19, %c0_20], %26 {strides = array<i32>} : memref<8x1xf32, #tpu.memory_space<vmem>>, vector<8x1xf32>,
    return
  }
  func.func @transform_0(%arg0: i32) -> (i32, i32) {
    %c0_i32 = arith.constant 0 : i32
    %c0_i32_0 = arith.constant 0 : i32
    return %arg0, %c0_i32 : i32, i32
  }
  func.func @transform_1(%arg0: i32) -> (i32, i32) {
    %c0_i32 = arith.constant 0 : i32
    %c0_i32_0 = arith.constant 0 : i32
    %c0_i32_1 = arith.constant 0 : i32
    return %c0_i32, %c0_i32_0 : i32, i32
  }
  func.func @transform_2(%arg0: i32) -> (i32, i32) {
    %c0_i32 = arith.constant 0 : i32
    %c0_i32_0 = arith.constant 0 : i32
    %c0_i32_1 = arith.constant 0 : i32
    return %c0_i32, %c0_i32_0 : i32, i32
  }
  func.func @transform_3(%arg0: i32) -> (i32, i32) {
    %c0_i32 = arith.constant 0 : i32
    %c0_i32_0 = arith.constant 0 : i32
    %c0_i32_1 = arith.constant 0 : i32
    return %c0_i32, %c0_i32_0 : i32, i32
  }
  func.func @transform_4(%arg0: i32) -> (i32, i32) {
    %c0_i32 = arith.constant 0 : i32
    %c0_i32_0 = arith.constant 0 : i32
    %c0_i32_1 = arith.constant 0 : i32
    return %c0_i32, %c0_i32_0 : i32, i32
  }
  func.func @transform_5(%arg0: i32) -> (i32, i32) {
    %c0_i32 = arith.constant 0 : i32
    %c0_i32_0 = arith.constant 0 : i32
    %c0_i32_1 = arith.constant 0 : i32
    return %c0_i32, %c0_i32_0 : i32, i32
  }
  func.func @transform_6(%arg0: i32) -> (i32, i32) {
    %c0_i32 = arith.constant 0 : i32
    %c0_i32_0 = arith.constant 0 : i32
    %c0_i32_1 = arith.constant 0 : i32
    return %c0_i32, %c0_i32_0 : i32, i32
  }
  func.func @transform_7(%arg0: i32) -> (i32, i32) {
    %c0_i32 = arith.constant 0 : i32
    %c0_i32_0 = arith.constant 0 : i32
    return %arg0, %c0_i32 : i32, i32
  }
  func.func @transform_8(%arg0: i32) -> (i32, i32) {
    %c0_i32 = arith.constant 0 : i32
    %c0_i32_0 = arith.constant 0 : i32
    return %arg0, %c0_i32 : i32, i32
  }
}

</mosaic_0001>

<llo_original>
// kernel: tpu_custom_call.1
$region0: #{tpu_custom_call.1}
  #allocation0 [shape = 'u32[]', space=smem, size = 0x4, offset = 0x4, fixed_abs, tag = 'smem constant byte address 0x4 - core index']
  #allocation1 [shape = 'u32[72,128]{1,0:T(1,128)}', space=vmem, size = 0x9000, scoped, tag = 'internal scratch']
  #allocation2 [shape = 'f32[1,1]{1,0:T(1,128)S(1)}', space=vmem, size = 0x200, scoped, tag = 'scoped memory for tpu_custom_call.1']
  %s0 = inlined_call_operand.vmem [shape: bf16[8,32], index: 0, kind: input, shape index: {}]
  %s1 = inlined_call_operand.vmem [shape: bf16[32,32], index: 1, kind: input, shape index: {}]
  %s2 = inlined_call_operand.vmem [shape: f32[1,32], index: 2, kind: input, shape index: {}]
  %s3 = inlined_call_operand.vmem [shape: f32[32,16], index: 3, kind: input, shape index: {}]
  %s4 = inlined_call_operand.vmem [shape: f32[1,16], index: 4, kind: input, shape index: {}]
  %s5 = inlined_call_operand.vmem [shape: f32[1,16], index: 5, kind: input, shape index: {}]
  %s6 = inlined_call_operand.<no memory space> [shape: f32[1,1], index: 6, kind: input, shape index: {}]
  %s7 = inlined_call_operand.vmem [shape: f32[8,1], index: 7, kind: output, shape index: {0}]
  %s8 = inlined_call_operand.hbm [shape: f32[8,16], index: 8, kind: output, shape index: {1}]
  %9 = xla_tuple %s7, %s8
  %s10 = sld [smem:[#allocation0]]
  $region46: #{tpu_custom_call.1} parent=0
    _
  %s12 = ssub.s32 1, %s10
  %s13 = scalar_select 0, %s12, %s10
  %v14 = vstv %s6
  %15 = vst [vmem:[#allocation2] sm:$0x1] %v14
  $region1: #{tpu_custom_call.1} parent=0
    #allocation3 [shape = 'u8[4096]{0}', space=vmem, size = 0x1000, scoped, tag = 'output window, operand 1, single buffered']
    #allocation4 [shape = 's32[1]{0}', space=sflag, size = 0x4, scoped, tag = 'scoped memory for tpu_custom_call.1']
    %16 = vsyncpa [#allocation4], 0
    // Predicated region
    $region2: #{tpu_custom_call.1} parent=1 // pred_check
      _
    $region3: #{tpu_custom_call.1} parent=1 // pred_check_branch
      %18 = sbr.rel (0) target = $region5
    $region4: #{tpu_custom_call.1} parent=1 // pred_region
      _
    $region5: #{tpu_custom_call.1} parent=1 // pred_fallthru
      _
    // Predicated region
    $region6: #{tpu_custom_call.1} parent=1 // pred_check
      _
    $region7: #{tpu_custom_call.1} parent=1 // pred_check_branch
      %20 = sbr.rel (0) target = $region9
    $region8: #{tpu_custom_call.1} parent=1 // pred_region
      _
    $region9: #{tpu_custom_call.1} parent=1 // pred_fallthru
      _
    // Predicated region
    $region10: #{tpu_custom_call.1} parent=1 // pred_check
      _
    $region11: #{tpu_custom_call.1} parent=1 // pred_check_branch
      %22 = sbr.rel (0) target = $region13
    $region12: #{tpu_custom_call.1} parent=1 // pred_region
      _
    $region13: #{tpu_custom_call.1} parent=1 // pred_fallthru
      _
    // Predicated region
    $region14: #{tpu_custom_call.1} parent=1 // pred_check
      _
    $region15: #{tpu_custom_call.1} parent=1 // pred_check_branch
      %24 = sbr.rel (0) target = $region17
    $region16: #{tpu_custom_call.1} parent=1 // pred_region
      _
    $region17: #{tpu_custom_call.1} parent=1 // pred_fallthru
      _
    // Predicated region
    $region18: #{tpu_custom_call.1} parent=1 // pred_check
      _
    $region19: #{tpu_custom_call.1} parent=1 // pred_check_branch
      %26 = sbr.rel (0) target = $region21
    $region20: #{tpu_custom_call.1} parent=1 // pred_region
      _
    $region21: #{tpu_custom_call.1} parent=1 // pred_fallthru
      _
    // Predicated region
    $region22: #{tpu_custom_call.1} parent=1 // pred_check
      _
    $region23: #{tpu_custom_call.1} parent=1 // pred_check_branch
      %28 = sbr.rel (0) target = $region25
    $region24: #{tpu_custom_call.1} parent=1 // pred_region
      _
    $region25: #{tpu_custom_call.1} parent=1 // pred_fallthru
      _
    // Predicated region
    $region26: #{tpu_custom_call.1} parent=1 // pred_check
      _
    $region27: #{tpu_custom_call.1} parent=1 // pred_check_branch
      %30 = sbr.rel (0) target = $region29
    $region28: #{tpu_custom_call.1} parent=1 // pred_region
      _
    $region29: #{tpu_custom_call.1} parent=1 // pred_fallthru
      _
    %v32 = vld [vmem:[%s0] sm:$0xf]
    %v33 = vld [vmem:[%s1] sm:$0xf]
    %v34 = vld [vmem:[%s1 + $0x4] sm:$0xf]
    %v35 = vld [vmem:[%s1 + $0x8] sm:$0xf]
    %v36 = vld [vmem:[%s1 + $0xc] sm:$0xf]
    %v37 = vld [vmem:[%s2] sm:$0x1]
    %v39 = vperm.slane %v37, 0
    %v45 = vunpack.c.l.b16 %v33
    %v46 = vunpack.c.l.b16 %v34
    %v47 = vunpack.c.l.b16 %v35
    %v48 = vunpack.c.l.b16 %v36
    %v49 = vpack.c.b16 %v46, %v45
    %v50 = vpack.c.b16 %v48, %v47
    %vm53 = vcmask 261120
    %v55 = vsel %vm53, %v32, 0
    %57 = vmatpush.bf16.msra.mxu0 0
    %58 = vmatpush.bf16.msra.mxu0 0
    %59 = vmatpush.bf16.msra.mxu0 0
    %60 = vmatpush.bf16.msra.mxu0 0
    %61 = vmatpush.bf16.msra.mxu0 0
    %62 = vmatpush.bf16.msra.mxu0 0
    %63 = vmatpush.bf16.msra.mxu0 %v50
    %64 = vmatpush.bf16.msra.mxu0 %v49
    %65 = vmatmul.bf16.gmra.mxu0 %v55
    %v66 = vpop.f32.mrf.mxu0
    %v67 = vadd.f32 %v39, %v66
    %v68 = vpop.f32.mrf.mxu0
    %69 = vdwg.mxu0
    %v70 = vmax.f32 %v67, 0.0
    %v71 = vld [vmem:[%s3] sm:$0xff]
    %v72 = vld [vmem:[%s3 + $0x8] sm:$0xff]
    %v73 = vld [vmem:[%s3 + $0x10] sm:$0xff]
    %v74 = vld [vmem:[%s3 + $0x18] sm:$0xff]
    %v75 = vld [vmem:[%s4] sm:$0x1]
    %v77 = vperm.slane %v75, 0
    %v80 = vsel %vm53, %v70, 0
    %82 = vmatpush.msra.mxu0 0.0
    %83 = vmatpush.msra.mxu0 0.0
    %84 = vmatpush.msra.mxu0 0.0
    %85 = vmatpush.msra.mxu0 0.0
    %86 = vmatpush.msra.mxu0 0.0
    %87 = vmatpush.msra.mxu0 0.0
    %88 = vmatpush.msra.mxu0 0.0
    %89 = vmatpush.msra.mxu0 0.0
    %90 = vmatpush.msra.mxu0 0.0
    %91 = vmatpush.msra.mxu0 0.0
    %92 = vmatpush.msra.mxu0 0.0
    %93 = vmatpush.msra.mxu0 0.0
    %94 = vmatpush.msra.mxu0 %v74
    %95 = vmatpush.msra.mxu0 %v73
    %96 = vmatpush.msra.mxu0 %v72
    %97 = vmatpush.msra.mxu0 %v71
    %98 = vmatmul.f32.gmra.mxu0 %v80
    %v99 = vpop.f32.mrf.mxu0
    %v100 = vadd.f32 %v77, %v99
    %101 = vdwg.mxu0
    %vm102 = vcmask 130048
    %103 = vst.msk [vmem:[#allocation3] sm:$0xff] %vm102, %v100
    %v104 = vld [vmem:[%s5] sm:$0x1]
    %v106 = vperm.slane %v104, 0
    %v108 = vmul.f32 %v100, %v106
    %v109 = vsel %vm102, %v108, 0.0
    %110 = vadd.xlane.f32.xlu0 %v109
    %v111 = vpop.xlane.xlu0 %110
    %v112 = vld [vmem:[#allocation2] sm:$0x1]
    %v114 = vperm.slane %v112, 0
    %v116 = vadd.f32 %v111, %v114
    %v117 = vxor.u32 %v116, 2147483648
    %v118 = vmul.f32 %v117, 1.442695
    %v119 = vpow.pop %v118
    %v120 = vadd.f32 %v119, 1.0
    %v121 = vrcp.pop %v120
    %v122 = vmul.f32 %v120, %v121
    %v123 = vsub.f32 1.0, %v122
    %v124 = vmul.f32 %v121, %v123
    %v125 = vadd.f32 %v121, %v124
    %vm126 = vweird.f32 %v120
    %vm127 = vweird.f32 %v121
    %vm128 = vmor %vm126, %vm127
    %v129 = vsel %vm128, %v121, %v125
    %v130 = vand.u32 2147483647, %v120
    %vm131 = vcmp.eq.f32.partialorder %v130, 8.507059e+37
    %v132 = vand.u32 %v120, 2147483648
    %v133 = vor.u32 1.1754944e-38, %v132
    %v134 = vsel %vm131, %v133, %v129
    %v135 = vmul.f32 1.0, %v134
    %vm136 = vcmask 7168
    %137 = vst.msk [vmem:[%s7] sm:$0xff] %vm136, %v135
    // Predicated region
    $region30: #{tpu_custom_call.1} parent=1 // pred_check
      _
    $region31: #{tpu_custom_call.1} parent=1 // pred_check_branch
      %139 = sbr.rel (0) target = $region33
    $region32: #{tpu_custom_call.1} parent=1 // pred_region
      _
    $region33: #{tpu_custom_call.1} parent=1 // pred_fallthru
      _
    // Predicated region
    $region34: #{tpu_custom_call.1} parent=1 // pred_check
      _
    $region35: #{tpu_custom_call.1} parent=1 // pred_check_branch
      %141 = sbr.rel (0) target = $region37
    $region36: #{tpu_custom_call.1} parent=1 // pred_region
      %143 = vsyncadd [#allocation4], 0
      %s145 = sshll.u32 [#allocation3], 4
      %s146 = int_to_ptr.vmem [resolvable:$true] %s145
      %s147 = sshll.u32 %s8, 4
      %s148 = int_to_ptr.hbm [resolvable:$true] %s147
      %150 = dma.vmem_to_hbm [thread:$0]  %s146, 128, %s148, [#allocation4]
    $region37: #{tpu_custom_call.1} parent=1 // pred_fallthru
      _
    // Predicated region
    $region38: #{tpu_custom_call.1} parent=1 // pred_check
      _
    $region39: #{tpu_custom_call.1} parent=1 // pred_check_branch
      %152 = sbr.rel (0) target = $region41
    $region40: #{tpu_custom_call.1} parent=1 // pred_region
      _
    $region41: #{tpu_custom_call.1} parent=1 // pred_fallthru
      _
    // Predicated region
    $region42: #{tpu_custom_call.1} parent=1 // pred_check
      _
    $region43: #{tpu_custom_call.1} parent=1 // pred_check_branch
      %154 = sbr.rel (0) target = $region45
    $region44: #{tpu_custom_call.1} parent=1 // pred_region
      %156 = dma.done [#allocation4], 128
    $region45: #{tpu_custom_call.1} parent=1 // pred_fallthru
      _
    %157 = vsyncpa [#allocation4], 1

</llo_original>
